<compile_context>
chip_gen: v6e
topology: v6e:2x2x1
jax: 0.10.0
libtpu: 0.0.40
codegen_flags: <defaults>
</compile_context>

<pallas_src>
import functools

import jax
import jax.numpy as jnp
from jax import lax
from jax.experimental import pallas as pl
from jax.experimental.pallas import tpu as pltpu


def _round_up(x, m):
    return ((x + m - 1) // m) * m


def _tile_div(dim_p, cap, unit=128):
    """Largest multiple of `unit` that divides `dim_p` and is <= cap."""
    n = dim_p // unit
    t_max = max(1, min(cap // unit, n))
    for t in range(t_max, 0, -1):
        if n % t == 0:
            return t * unit
    return unit


def _dense_kernel_out_acc(x_ref, w_ref, b_ref, o_ref, *, cast_bf16):
    # f32-output path: accumulate directly into the resident output tile.
    # x_ref: (tm, tk), w_ref: (tk, tn) in (in, out) layout, b_ref: (1, tn),
    # o_ref: (tm, tn) f32 (block index constant across k -> resident).
    k = pl.program_id(2)
    a = x_ref[...]
    w = w_ref[...]
    if cast_bf16:
        a = a.astype(jnp.bfloat16)
        w = w.astype(jnp.bfloat16)
    part = lax.dot_general(
        a, w,
        dimension_numbers=(((1,), (0,)), ((), ())),   # NN: no weight transpose
        preferred_element_type=jnp.float32)

    @pl.when(k == 0)
    def _():
        # first K step: direct assign, bias folded in (no zero-init store)
        o_ref[...] = part + b_ref[...].astype(jnp.float32)

    @pl.when(k != 0)
    def _():
        o_ref[...] += part


def _dense_kernel_scratch_acc(x_ref, w_ref, b_ref, o_ref, acc_ref, *, cast_bf16):
    # Fallback for non-f32 outputs: f32 VMEM accumulator, single downcast.
    k = pl.program_id(2)
    a = x_ref[...]
    w = w_ref[...]
    if cast_bf16:
        a = a.astype(jnp.bfloat16)
        w = w.astype(jnp.bfloat16)
    part = lax.dot_general(
        a, w,
        dimension_numbers=(((1,), (0,)), ((), ())),
        preferred_element_type=jnp.float32)

    @pl.when(k == 0)
    def _():
        acc_ref[...] = part + b_ref[...].astype(jnp.float32)

    @pl.when(k != 0)
    def _():
        acc_ref[...] += part

    @pl.when(k == pl.num_programs(2) - 1)
    def _():
        o_ref[...] = acc_ref[...].astype(o_ref.dtype)


def prepare_dense_params(weight, bias):
    """One-time (init-time) re-layout of nn.Linear parameters.

    weight: (out_features, in_features)  -- PyTorch layout
    bias  : (out_features,)
    Returns (w_kn, b2d, out_features, in_features):
      w_kn: (K_p, N_p) padded weight.T (contraction dim first)
      b2d : (1, N_p) padded bias (padded lanes are zero)
    """
    N, K = weight.shape
    K_p = _round_up(K, 128)
    N_p = _round_up(N, 128)
    w_kn = jnp.pad(weight.T, ((0, K_p - K), (0, N_p - N)))
    b2d = jnp.pad(bias, (0, N_p - N)).reshape(1, N_p)
    return w_kn, b2d, N, K


def dense_apply(x, w_kn, b2d, out_features, *, tm=None, tn=None, tk=None,
                mxu_bf16=False):
    """y = x @ W^T + b using pre-laid-out params from prepare_dense_params.

    x   : (B, in_features)
    w_kn: (K_p, N_p)   pre-transposed, pre-padded weight
    b2d : (1, N_p)     pre-padded bias
    returns (B, out_features)
    """
    B, K = x.shape
    K_p, N_p = w_kn.shape
    assert K <= K_p
    out_dtype = x.dtype
    itemsize = jnp.dtype(x.dtype).itemsize

    # sublane multiple for the batch axis (f32 -> 8, 16-bit dtypes -> 16)
    sub = 8 if itemsize == 4 else 16
    M_p = _round_up(B, sub)

    # ---- tile selection ------------------------------------------------
    tn_auto = tn is None
    if tm is None:
        tm = M_p if M_p <= 512 else 512
    if tn is None:
        tn = _tile_div(N_p, min(512, N_p))
    if tk is None:
        tk = _tile_div(K_p, min(1024, K_p))

    M_p = _round_up(M_p, tm)

    # v7x: 2 TensorCores share the 'parallel' axes; if the batch axis has a
    # single block, split N into >= 2 blocks so both cores get work.
    if tn_auto and tn == N_p and (M_p // tm == 1) and N_p >= 256:
        tn = _tile_div(N_p, N_p // 2)

    # validate tiles (covers user-supplied tm/tn/tk as well)
    assert tm % sub == 0 and M_p % tm == 0, (tm, M_p)
    assert tn % 128 == 0 and N_p % tn == 0, (tn, N_p)
    assert tk % 128 == 0 and K_p % tk == 0, (tk, K_p)

    x_p = x if (M_p == B and K_p == K) else jnp.pad(
        x, ((0, M_p - B), (0, K_p - K)))

    grid = (M_p // tm, N_p // tn, K_p // tk)
    grid_i, grid_j, _ = grid

    cost = pl.CostEstimate(
        flops=2 * M_p * K_p * N_p,
        transcendentals=0,
        bytes_accessed=(grid_j * M_p * K_p * itemsize                 # x re-read per N block
                        + grid_i * K_p * N_p * w_kn.dtype.itemsize    # W re-read per M block
                        + grid_i * N_p * b2d.dtype.itemsize           # bias
                        + M_p * N_p * jnp.dtype(out_dtype).itemsize)) # output

    in_specs = [
        pl.BlockSpec((tm, tk), lambda i, j, k: (i, k)),   # x tile
        pl.BlockSpec((tk, tn), lambda i, j, k: (k, j)),   # W tile, (in, out) layout
        pl.BlockSpec((1, tn), lambda i, j, k: (0, j)),    # bias tile
    ]
    out_spec = pl.BlockSpec((tm, tn), lambda i, j, k: (i, j))

    if jnp.dtype(out_dtype) == jnp.dtype(jnp.float32):
        kernel = functools.partial(_dense_kernel_out_acc, cast_bf16=mxu_bf16)
        scratch = []
    else:
        kernel = functools.partial(_dense_kernel_scratch_acc, cast_bf16=mxu_bf16)
        scratch = [pltpu.VMEM((tm, tn), jnp.float32)]

    out = pl.pallas_call(
        kernel,
        out_shape=jax.ShapeDtypeStruct((M_p, N_p), out_dtype),
        grid_spec=pltpu.PrefetchScalarGridSpec(
            num_scalar_prefetch=0,
            grid=grid,
            in_specs=in_specs,
            out_specs=out_spec,
            scratch_shapes=scratch,
        ),
        compiler_params=pltpu.CompilerParams(
            dimension_semantics=("parallel", "parallel", "arbitrary"),
            vmem_limit_bytes=32 * 1024 * 1024),
        cost_estimate=cost,
    )(x_p, w_kn, b2d)

    # slice off lane/sublane padding
    return out[:B, :out_features]


def dense(x, weight, bias, **kwargs):
    """Single-shot convenience: Dense(in,out)(x) with PyTorch-layout params.

    For repeated calls (real inference), call prepare_dense_params once and
    reuse its outputs with dense_apply so weight padding/transpose stays off
    the per-call path.
    """
    w_kn, b2d, n_out, _ = prepare_dense_params(weight, bias)
    return dense_apply(x, w_kn, b2d, n_out, **kwargs)


if __name__ == "__main__":
    key = jax.random.PRNGKey(0)
    keys = jax.random.split(key, 9)

    # --- small test matching the module: Dense(32, 16), batch=8 ---
    batch, in_features, out_features = 8, 32, 16
    bound = 1.0 / (in_features ** 0.5)
    weight = jax.random.uniform(
        keys[0], (out_features, in_features), jnp.float32, -bound, bound)
    bias = jax.random.uniform(
        keys[1], (out_features,), jnp.float32, -bound, bound)
    x = jax.random.normal(keys[2], (batch, in_features), jnp.float32)

    w_kn, b2d, n_out, _ = prepare_dense_params(weight, bias)  # init-time path
    y = jax.block_until_ready(dense_apply(x, w_kn, b2d, n_out))
    y_ref = x @ weight.T + bias
    assert y.shape == (batch, out_features)
    assert jnp.allclose(y, y_ref, atol=1e-5, rtol=1e-5)

    # --- non-aligned shapes: padding + multi-block N grid ---
    B2, K2, N2 = 40, 200, 300
    bound2 = 1.0 / (K2 ** 0.5)
    w2 = jax.random.uniform(keys[3], (N2, K2), jnp.float32, -bound2, bound2)
    b2 = jax.random.uniform(keys[4], (N2,), jnp.float32, -bound2, bound2)
    x2 = jax.random.normal(keys[5], (B2, K2), jnp.float32)
    y2 = jax.block_until_ready(dense(x2, w2, b2))
    y2_ref = x2 @ w2.T + b2
    assert y2.shape == (B2, N2)
    assert jnp.allclose(y2, y2_ref, atol=1e-4, rtol=1e-4)

    # --- larger K: exercises the K-reduction grid (accumulate into o_ref) ---
    B3, K3, N3 = 24, 1500, 260
    bound3 = 1.0 / (K3 ** 0.5)
    w3 = jax.random.uniform(keys[6], (N3, K3), jnp.float32, -bound3, bound3)
    b3 = jax.random.uniform(keys[7], (N3,), jnp.float32, -bound3, bound3)
    x3 = jax.random.normal(keys[8], (B3, K3), jnp.float32)
    y3 = jax.block_until_ready(dense(x3, w3, b3))
    y3_ref = jnp.dot(x3, w3.T, precision=lax.Precision.HIGHEST) + b3
    assert y3.shape == (B3, N3)
    assert jnp.allclose(y3, y3_ref, atol=2e-3, rtol=2e-3)

    print("KERNEL_OK")
</pallas_src>

<mosaic_0001>
module attributes {stable_mosaic.version = 11 : i64} {
  func.func @_dense_kernel_out_acc(%arg0: i32, %arg1: i32, %arg2: i32, %arg3: memref<8x128xf32, #tpu.memory_space<vmem>>, %arg4: memref<128x128xf32, #tpu.memory_space<vmem>>, %arg5: memref<1x128xf32, #tpu.memory_space<vmem>>, %arg6: memref<8x128xf32, #tpu.memory_space<vmem>>) attributes {dimension_semantics = [#tpu.dimension_semantics<parallel>, #tpu.dimension_semantics<parallel>, #tpu.dimension_semantics<arbitrary>], iteration_bounds = array<i64: 1, 1, 1>, scalar_prefetch = 0 : i64, scratch_operands = 0 : i64, tpu.core_type = #tpu.core_type<tc>, window_params = [{transform_indices = @transform_0, window_bounds = array<i64: 8, 128>}, {transform_indices = @transform_1, window_bounds = array<i64: 128, 128>}, {transform_indices = @transform_2, window_bounds = array<i64: 1, 128>}, {transform_indices = @transform_3, window_bounds = array<i64: 8, 128>}]} {
    %c0 = arith.constant 0 : index
    %c0_0 = arith.constant 0 : index
    %0 = vector.load %arg3[%c0, %c0_0] : memref<8x128xf32, #tpu.memory_space<vmem>>, vector<8x128xf32>
    %c0_1 = arith.constant 0 : index
    %c0_2 = arith.constant 0 : index
    %1 = vector.load %arg4[%c0_1, %c0_2] : memref<128x128xf32, #tpu.memory_space<vmem>>, vector<128x128xf32>
    %cst = arith.constant dense<0.000000e+00> : vector<8x128xf32>
    %2 = tpu.matmul %0, %1, %cst {dimension_numbers = #tpu.dot_dimension_numbers<[1], [0], [0], [1], [0, 0, 1, 1], [], []>} : vector<8x128xf32>, vector<128x128xf32>, vector<8x128xf32> -> vector<8x128xf32>
    %c0_i32 = arith.constant 0 : i32
    %3 = arith.cmpi eq, %arg2, %c0_i32 : i32
    %4 = arith.extui %3 : i1 to i32
    %c0_i32_3 = arith.constant 0 : i32
    %5 = arith.cmpi ne, %4, %c0_i32_3 : i32
    scf.if %5 {
      %c0_6 = arith.constant 0 : index
      %c0_7 = arith.constant 0 : index
      %9 = vector.load %arg5[%c0_6, %c0_7] : memref<1x128xf32, #tpu.memory_space<vmem>>, vector<1x128xf32>
      %10 = vector.broadcast %9 : vector<1x128xf32> to vector<8x128xf32>
      %11 = arith.addf %2, %10 : vector<8x128xf32>
      %c0_8 = arith.constant 0 : index
      %c0_9 = arith.constant 0 : index
      %12 = vector.load %arg6[%c0_8, %c0_9] : memref<8x128xf32, #tpu.memory_space<vmem>>, vector<8x128xf32>
      tpu.vector_store %arg6[%c0_8, %c0_9], %11 {strides = array<i32>} : memref<8x128xf32, #tpu.memory_space<vmem>>, vector<8x128xf32>,
    } else {
    }
    %c0_i32_4 = arith.constant 0 : i32
    %6 = arith.cmpi ne, %arg2, %c0_i32_4 : i32
    %7 = arith.extui %6 : i1 to i32
    %c0_i32_5 = arith.constant 0 : i32
    %8 = arith.cmpi ne, %7, %c0_i32_5 : i32
    scf.if %8 {
      %c0_6 = arith.constant 0 : index
      %c0_7 = arith.constant 0 : index
      %9 = vector.load %arg6[%c0_6, %c0_7] : memref<8x128xf32, #tpu.memory_space<vmem>>, vector<8x128xf32>
      %10 = arith.addf %9, %2 : vector<8x128xf32>
      %c0_8 = arith.constant 0 : index
      %c0_9 = arith.constant 0 : index
      %11 = vector.load %arg6[%c0_8, %c0_9] : memref<8x128xf32, #tpu.memory_space<vmem>>, vector<8x128xf32>
      tpu.vector_store %arg6[%c0_8, %c0_9], %10 {strides = array<i32>} : memref<8x128xf32, #tpu.memory_space<vmem>>, vector<8x128xf32>,
    } else {
    }
    return
  }
  func.func @transform_0(%arg0: i32, %arg1: i32, %arg2: i32) -> (i32, i32) {
    %c0_i32 = arith.constant 0 : i32
    return %arg0, %arg2 : i32, i32
  }
  func.func @transform_1(%arg0: i32, %arg1: i32, %arg2: i32) -> (i32, i32) {
    %c0_i32 = arith.constant 0 : i32
    return %arg2, %arg1 : i32, i32
  }
  func.func @transform_2(%arg0: i32, %arg1: i32, %arg2: i32) -> (i32, i32) {
    %c0_i32 = arith.constant 0 : i32
    %c0_i32_0 = arith.constant 0 : i32
    return %c0_i32, %arg1 : i32, i32
  }
  func.func @transform_3(%arg0: i32, %arg1: i32, %arg2: i32) -> (i32, i32) {
    %c0_i32 = arith.constant 0 : i32
    return %arg0, %arg1 : i32, i32
  }
}

</mosaic_0001>

<llo_original>
// kernel: tpu_custom_call.1
$region0: #{tpu_custom_call.1}
  #allocation0 [shape = 'u32[]', space=smem, size = 0x4, offset = 0x4, fixed_abs, tag = 'smem constant byte address 0x4 - core index']
  #allocation1 [shape = 'u32[144,128]{1,0:T(1,128)}', space=vmem, size = 0x12000, scoped, tag = 'internal scratch']
  %s0 = inlined_call_operand.hbm [shape: f32[8,128], index: 0, kind: input, shape index: {}]
  %s1 = inlined_call_operand.hbm [shape: f32[128,128], index: 1, kind: input, shape index: {}]
  %s2 = inlined_call_operand.vmem [shape: f32[1,128], index: 2, kind: input, shape index: {}]
  %s3 = inlined_call_operand.hbm [shape: f32[8,128], index: 3, kind: output, shape index: {}]
  %s4 = sld [smem:[#allocation0]]
  $region38: #{tpu_custom_call.1} parent=0
    _
  %s6 = ssub.s32 1, %s4
  %s7 = scalar_select 0, %s6, %s4
  $region1: #{tpu_custom_call.1} parent=0
    #allocation2 [shape = 'u8[4096]{0}', space=vmem, size = 0x1000, scoped, tag = 'input window, operand 0, single buffered']
    #allocation3 [shape = 's32[1]{0}', space=sflag, size = 0x4, scoped, tag = 'scoped memory for tpu_custom_call.1']
    #allocation4 [shape = 's32[1]{0}', space=sflag, size = 0x4, scoped, tag = 'scoped memory for tpu_custom_call.1']
    #allocation5 [shape = 'u8[65536]{0}', space=vmem, size = 0x10000, scoped, tag = 'input window, operand 1, single buffered']
    #allocation6 [shape = 's32[1]{0}', space=sflag, size = 0x4, scoped, tag = 'scoped memory for tpu_custom_call.1']
    #allocation7 [shape = 'u8[4096]{0}', space=vmem, size = 0x1000, scoped, tag = 'output window, operand 0, single buffered']
    %8 = vsyncpa [#allocation3], 0
    %9 = vsyncpa [#allocation6], 0
    %10 = vsyncpa [#allocation4], 0
    // Predicated region
    $region2: #{tpu_custom_call.1} parent=1 // pred_check
      _
    $region3: #{tpu_custom_call.1} parent=1 // pred_check_branch
      %12 = sbr.rel (0) target = $region5
    $region4: #{tpu_custom_call.1} parent=1 // pred_region
      %s14 = ssub.s32 128, 128
      %15 = vsyncadd [#allocation3], %s14
      %s17 = sshll.u32 [#allocation2], 4
      %s18 = int_to_ptr.vmem [resolvable:$true] %s17
      %20 = dma.hbm_to_vmem [thread:$0]  %s0, 128, %s18, [#allocation3]
    $region5: #{tpu_custom_call.1} parent=1 // pred_fallthru
      _
    // Predicated region
    $region6: #{tpu_custom_call.1} parent=1 // pred_check
      _
    $region7: #{tpu_custom_call.1} parent=1 // pred_check_branch
      %22 = sbr.rel (0) target = $region9
    $region8: #{tpu_custom_call.1} parent=1 // pred_region
      %s24 = ssub.s32 2048, 2048
      %25 = vsyncadd [#allocation6], %s24
      %s26 = sshll.u32 [#allocation5], 4
      %s27 = int_to_ptr.vmem [resolvable:$true] %s26
      %32 = dma.hbm_to_vmem [thread:$0]  %s1, 2048, %s27, [#allocation6], 128, 128, 8
    $region9: #{tpu_custom_call.1} parent=1 // pred_fallthru
      _
    // Predicated region
    $region10: #{tpu_custom_call.1} parent=1 // pred_check
      _
    $region11: #{tpu_custom_call.1} parent=1 // pred_check_branch
      %34 = sbr.rel (0) target = $region13
    $region12: #{tpu_custom_call.1} parent=1 // pred_region
      _
    $region13: #{tpu_custom_call.1} parent=1 // pred_fallthru
      _
    // Predicated region
    $region14: #{tpu_custom_call.1} parent=1 // pred_check
      _
    $region15: #{tpu_custom_call.1} parent=1 // pred_check_branch
      %36 = sbr.rel (0) target = $region17
    $region16: #{tpu_custom_call.1} parent=1 // pred_region
      %37 = dma.done [#allocation3], 128
    $region17: #{tpu_custom_call.1} parent=1 // pred_fallthru
      _
    // Predicated region
    $region18: #{tpu_custom_call.1} parent=1 // pred_check
      _
    $region19: #{tpu_custom_call.1} parent=1 // pred_check_branch
      %39 = sbr.rel (0) target = $region21
    $region20: #{tpu_custom_call.1} parent=1 // pred_region
      %40 = dma.done [#allocation6], 2048
    $region21: #{tpu_custom_call.1} parent=1 // pred_fallthru
      _
    %v41 = vld [vmem:[#allocation2] sm:$0xff]
    %v42 = vld [vmem:[#allocation5] sm:$0xff]
    %v43 = vld [vmem:[#allocation5 + $0x8] sm:$0xff]
    %v44 = vld [vmem:[#allocation5 + $0x10] sm:$0xff]
    %v45 = vld [vmem:[#allocation5 + $0x18] sm:$0xff]
    %v46 = vld [vmem:[#allocation5 + $0x20] sm:$0xff]
    %v47 = vld [vmem:[#allocation5 + $0x28] sm:$0xff]
    %v48 = vld [vmem:[#allocation5 + $0x30] sm:$0xff]
    %v49 = vld [vmem:[#allocation5 + $0x38] sm:$0xff]
    %v50 = vld [vmem:[#allocation5 + $0x40] sm:$0xff]
    %v51 = vld [vmem:[#allocation5 + $0x48] sm:$0xff]
    %v52 = vld [vmem:[#allocation5 + $0x50] sm:$0xff]
    %v53 = vld [vmem:[#allocation5 + $0x58] sm:$0xff]
    %v54 = vld [vmem:[#allocation5 + $0x60] sm:$0xff]
    %v55 = vld [vmem:[#allocation5 + $0x68] sm:$0xff]
    %v56 = vld [vmem:[#allocation5 + $0x70] sm:$0xff]
    %v57 = vld [vmem:[#allocation5 + $0x78] sm:$0xff]
    %58 = vmatprep.subr.mxu0 0.0
    %59 = vmatpush1.msra.mxu0 %v57
    %60 = vmatprep.subr.mxu0 0.0
    %61 = vmatpush1.msra.mxu0 %v56
    %62 = vmatprep.subr.mxu0 0.0
    %63 = vmatpush1.msra.mxu0 %v55
    %64 = vmatprep.subr.mxu0 0.0
    %65 = vmatpush1.msra.mxu0 %v54
    %66 = vmatprep.subr.mxu0 0.0
    %67 = vmatpush1.msra.mxu0 %v53
    %68 = vmatprep.subr.mxu0 0.0
    %69 = vmatpush1.msra.mxu0 %v52
    %70 = vmatprep.subr.mxu0 0.0
    %71 = vmatpush1.msra.mxu0 %v51
    %72 = vmatprep.subr.mxu0 0.0
    %73 = vmatpush1.msra.mxu0 %v50
    %74 = vmatprep.subr.mxu0 0.0
    %75 = vmatpush1.msra.mxu0 %v49
    %76 = vmatprep.subr.mxu0 0.0
    %77 = vmatpush1.msra.mxu0 %v48
    %78 = vmatprep.subr.mxu0 0.0
    %79 = vmatpush1.msra.mxu0 %v47
    %80 = vmatprep.subr.mxu0 0.0
    %81 = vmatpush1.msra.mxu0 %v46
    %82 = vmatprep.subr.mxu0 0.0
    %83 = vmatpush1.msra.mxu0 %v45
    %84 = vmatprep.subr.mxu0 0.0
    %85 = vmatpush1.msra.mxu0 %v44
    %86 = vmatprep.subr.mxu0 0.0
    %87 = vmatpush1.msra.mxu0 %v43
    %88 = vmatprep.subr.mxu0 0.0
    %89 = vmatpush1.msra.mxu0 %v42
    %90 = vmatprep.subr.mxu0 0.0
    %91 = vmatpush2.msra.mxu0 0.0
    %92 = vmatprep.subr.mxu0 0.0
    %93 = vmatpush2.msra.mxu0 0.0
    %94 = vmatprep.subr.mxu0 0.0
    %95 = vmatpush2.msra.mxu0 0.0
    %96 = vmatprep.subr.mxu0 0.0
    %97 = vmatpush2.msra.mxu0 0.0
    %98 = vmatprep.subr.mxu0 0.0
    %99 = vmatpush2.msra.mxu0 0.0
    %100 = vmatprep.subr.mxu0 0.0
    %101 = vmatpush2.msra.mxu0 0.0
    %102 = vmatprep.subr.mxu0 0.0
    %103 = vmatpush2.msra.mxu0 0.0
    %104 = vmatprep.subr.mxu0 0.0
    %105 = vmatpush2.msra.mxu0 0.0
    %106 = vmatprep.subr.mxu0 0.0
    %107 = vmatpush2.msra.mxu0 0.0
    %108 = vmatprep.subr.mxu0 0.0
    %109 = vmatpush2.msra.mxu0 0.0
    %110 = vmatprep.subr.mxu0 0.0
    %111 = vmatpush2.msra.mxu0 0.0
    %112 = vmatprep.subr.mxu0 0.0
    %113 = vmatpush2.msra.mxu0 0.0
    %114 = vmatprep.subr.mxu0 0.0
    %115 = vmatpush2.msra.mxu0 0.0
    %116 = vmatprep.subr.mxu0 0.0
    %117 = vmatpush2.msra.mxu0 0.0
    %118 = vmatprep.subr.mxu0 0.0
    %119 = vmatpush2.msra.mxu0 0.0
    %120 = vmatprep.subr.mxu0 0.0
    %121 = vmatpush2.msra.mxu0 0.0
    %122 = vmatprep.mubr.f32.mxu0 0.0
    %123 = vmatmul.mubr.f32.gmra.mxu0 %v41
    %v124 = vpop.f32.mrf.mxu0
    %v125 = vadd.f32 0.0, %v124
    %v126 = vpop.f32.mrf.mxu0
    %127 = vdwg.mxu0
    %p128 = scmp.eq.s32.totalorder 0, 0
    // Predicated region
    $region22: #{tpu_custom_call.1} parent=1 // pred_check
      %p129 = pneg %p128
    $region23: #{tpu_custom_call.1} parent=1 // pred_check_branch
      %131 = sbr.rel (%p129) target = $region25
    $region24: #{tpu_custom_call.1} parent=1 // pred_region
      %v132 = vld [vmem:[%s2] sm:$0x1]
      %v134 = vlaneseq
      %v135 = vshrl.u32 %v134, 7
      %v136 = vsub.s32 0, %v135
      %v137 = vrot.slane %v132, %v136
      %v139 = vadd.f32 %v125, %v137
      %140 = vst [vmem:[#allocation7] sm:$0xff] %v139
    $region25: #{tpu_custom_call.1} parent=1 // pred_fallthru
      _
    %p141 = scmp.ne.s32.totalorder 0, 0
    // Predicated region
    $region26: #{tpu_custom_call.1} parent=1 // pred_check
      %p142 = pneg %p141
    $region27: #{tpu_custom_call.1} parent=1 // pred_check_branch
      %144 = sbr.rel (%p142) target = $region29
    $region28: #{tpu_custom_call.1} parent=1 // pred_region
      %v145 = vld [vmem:[#allocation7] sm:$0xff]
      %v146 = vadd.f32 %v145, %v125
      %147 = vst [vmem:[#allocation7] sm:$0xff] %v146
    $region29: #{tpu_custom_call.1} parent=1 // pred_fallthru
      _
    // Predicated region
    $region30: #{tpu_custom_call.1} parent=1 // pred_check
      _
    $region31: #{tpu_custom_call.1} parent=1 // pred_check_branch
      %149 = sbr.rel (0) target = $region33
    $region32: #{tpu_custom_call.1} parent=1 // pred_region
      %s151 = ssub.s32 128, 128
      %152 = vsyncadd [#allocation4], %s151
      %s154 = sshll.u32 [#allocation7], 4
      %s155 = int_to_ptr.vmem [resolvable:$true] %s154
      %157 = dma.vmem_to_hbm [thread:$0]  %s155, 128, %s3, [#allocation4]
    $region33: #{tpu_custom_call.1} parent=1 // pred_fallthru
      _
    // Predicated region
    $region34: #{tpu_custom_call.1} parent=1 // pred_check
      _
    $region35: #{tpu_custom_call.1} parent=1 // pred_check_branch
      %159 = sbr.rel (0) target = $region37
    $region36: #{tpu_custom_call.1} parent=1 // pred_region
      %160 = dma.done [#allocation4], 128
    $region37: #{tpu_custom_call.1} parent=1 // pred_fallthru
      _
    %161 = vsyncpa [#allocation3], 1
    %162 = vsyncpa [#allocation6], 1
    %163 = vsyncpa [#allocation4], 1

</llo_original>
